<compile_context>
chip_gen: v6e
topology: v6e:2x2x1
jax: 0.10.0
libtpu: 0.0.40
codegen_flags: <defaults>
</compile_context>

<pallas_src>
import jax
import jax.numpy as jnp
import numpy as np
from jax.experimental import pallas as pl
from jax.experimental.pallas import tpu as pltpu


def build_unpool_weight(pooling_list, channels_per_edge, dtype=jnp.float32):
    """The original 0/1 unpool matrix (out*C, in*C); used only for the reference check."""
    in_edges = len(pooling_list)
    out_edges = sum(len(t) for t in pooling_list)
    w = np.zeros((out_edges * channels_per_edge, in_edges * channels_per_edge),
                 dtype=np.float32)
    for i, pair in enumerate(pooling_list):
        for j in pair:
            for c in range(channels_per_edge):
                w[j * channels_per_edge + c, i * channels_per_edge + c] = 1.0
    return jnp.asarray(w, dtype=dtype)


def _build_copy_runs(pooling_list, channels_per_edge):
    """(dst_row_start, src_row_start, n_rows) runs implementing W @ x as row copies.

    Valid because each output edge belongs to exactly one pooling group, i.e.
    every row of the unpool weight has exactly one nonzero (validated here: the
    matmul would otherwise sum contributions and a copy would not).
    """
    out_edges = sum(len(t) for t in pooling_list)
    src_edge = [-1] * out_edges
    for i, pair in enumerate(pooling_list):
        for j in pair:
            if src_edge[j] != -1:
                raise ValueError(
                    f"output edge {j} mapped from multiple input edges; "
                    "gather rewrite requires exactly one nonzero per weight row")
            src_edge[j] = i
    if any(s < 0 for s in src_edge):
        raise ValueError("pooling_list does not cover all output edges")

    C = channels_per_edge
    runs = []
    j = 0
    while j < out_edges:
        start = j
        # Merge consecutive output edges whose source edges are also consecutive.
        while j + 1 < out_edges and src_edge[j + 1] == src_edge[j] + 1:
            j += 1
        runs.append((start * C, src_edge[start] * C, (j - start + 1) * C))
        j += 1
    return tuple(runs)


def _choose_time_tile(T, K, M, itemsize, budget_bytes=8 * 1024 * 1024):
    """Largest lane-dense (multiple-of-128) divisor of T whose double-buffered
    in+out working set fits the VMEM budget; otherwise the full-T block."""
    def working_set(tt):
        return 2 * (K + M) * tt * itemsize  # 2x = double buffering of in + out
    for cand in (2048, 1024, 512, 256, 128):
        if T % cand == 0 and working_set(cand) <= budget_bytes:
            return cand
    return T


def make_skeleton_unpool(pooling_list, channels_per_edge):
    """Returns unpool(x): (B, in_edges*C, T) -> (B, out_edges*C, T)."""
    C = channels_per_edge
    K = len(pooling_list) * C
    M = sum(len(t) for t in pooling_list) * C
    copy_runs = _build_copy_runs(pooling_list, C)

    def kernel(x_ref, o_ref):
        # x_ref: (1, K, tT) VMEM, o_ref: (1, M, tT) VMEM.
        # Pure data movement: static row-range copies realize the 0/1 matmul.
        for dst, src, n in copy_runs:
            o_ref[0, dst:dst + n, :] = x_ref[0, src:src + n, :]

    def unpool(x):
        B, K2, T = x.shape
        assert K2 == K, f"channel mismatch: expected {K}, got {K2}"
        itemsize = jnp.dtype(x.dtype).itemsize
        tT = _choose_time_tile(T, K, M, itemsize)
        n_t = T // tT

        return pl.pallas_call(
            kernel,
            out_shape=jax.ShapeDtypeStruct((B, M, T), x.dtype),
            grid=(B, n_t),
            in_specs=[pl.BlockSpec((1, K, tT), lambda b, t: (b, 0, t))],
            out_specs=pl.BlockSpec((1, M, tT), lambda b, t: (b, 0, t)),
            compiler_params=pltpu.CompilerParams(
                dimension_semantics=("parallel", "parallel"),
                vmem_limit_bytes=32 * 1024 * 1024,
            ),
            cost_estimate=pl.CostEstimate(
                flops=0,
                transcendentals=0,
                bytes_accessed=(B * K * T + B * M * T) * itemsize,
            ),
        )(x)

    return unpool


if __name__ == "__main__":
    # Small deterministic config consistent with the module.
    pooling_list = [[0, 1], [2], [3, 4], [5, 6, 7]]
    channels_per_edge = 4
    in_edges = len(pooling_list)                   # 4
    out_edges = sum(len(t) for t in pooling_list)  # 8
    K = in_edges * channels_per_edge               # 16
    M = out_edges * channels_per_edge              # 32

    unpool = make_skeleton_unpool(pooling_list, channels_per_edge)
    weight_np = np.asarray(build_unpool_weight(pooling_list, channels_per_edge))

    key = jax.random.PRNGKey(0)

    # 1) Small demo shape (full-T block path, T < 128).
    batch, T = 2, 16
    x = jax.random.normal(key, (batch, K, T), dtype=jnp.float32)
    out = jax.block_until_ready(unpool(x))
    ref = np.einsum("mk,bkt->bmt", weight_np, np.asarray(x))  # exact host reference
    np.testing.assert_allclose(np.asarray(out), ref, rtol=0, atol=0)

    # 2) Lane-dense tiled path (T multiple of 128 exercises grid=(B, T//128)).
    x2 = jax.random.normal(key, (batch, K, 256), dtype=jnp.float32)
    out2 = jax.block_until_ready(unpool(x2))
    ref2 = np.einsum("mk,bkt->bmt", weight_np, np.asarray(x2))
    np.testing.assert_allclose(np.asarray(out2), ref2, rtol=0, atol=0)

    print("KERNEL_OK")
</pallas_src>

<mosaic_0001>
module attributes {stable_mosaic.version = 11 : i64} {
  func.func @kernel(%arg0: i32, %arg1: i32, %arg2: memref<1x16x16xf32, #tpu.memory_space<vmem>>, %arg3: memref<1x32x16xf32, #tpu.memory_space<vmem>>) attributes {dimension_semantics = [#tpu.dimension_semantics<parallel>, #tpu.dimension_semantics<parallel>], iteration_bounds = array<i64: 2, 1>, scalar_prefetch = 0 : i64, scratch_operands = 0 : i64, tpu.core_type = #tpu.core_type<tc>, window_params = [{transform_indices = @transform_0, window_bounds = array<i64: 1, 16, 16>}, {transform_indices = @transform_1, window_bounds = array<i64: 1, 32, 16>}]} {
    %c0 = arith.constant 0 : index
    %c0_0 = arith.constant 0 : index
    %c0_1 = arith.constant 0 : index
    %0 = vector.load %arg2[%c0, %c0_0, %c0_1] : memref<1x16x16xf32, #tpu.memory_space<vmem>>, vector<1x4x16xf32>
    %1 = vector.shape_cast %0 : vector<1x4x16xf32> to vector<4x16xf32>
    %c0_2 = arith.constant 0 : index
    %c0_3 = arith.constant 0 : index
    %c0_4 = arith.constant 0 : index
    %2 = vector.load %arg3[%c0_2, %c0_3, %c0_4] : memref<1x32x16xf32, #tpu.memory_space<vmem>>, vector<1x4x16xf32>
    %3 = vector.shape_cast %2 : vector<1x4x16xf32> to vector<4x16xf32>
    %4 = vector.shape_cast %1 : vector<4x16xf32> to vector<1x4x16xf32>
    tpu.vector_store %arg3[%c0_2, %c0_3, %c0_4], %4 {strides = array<i32>} : memref<1x32x16xf32, #tpu.memory_space<vmem>>, vector<1x4x16xf32>,
    %c0_5 = arith.constant 0 : index
    %c0_6 = arith.constant 0 : index
    %c0_7 = arith.constant 0 : index
    %5 = vector.load %arg2[%c0_5, %c0_6, %c0_7] : memref<1x16x16xf32, #tpu.memory_space<vmem>>, vector<1x12x16xf32>
    %6 = vector.shape_cast %5 : vector<1x12x16xf32> to vector<12x16xf32>
    %c0_8 = arith.constant 0 : index
    %c4 = arith.constant 4 : index
    %c0_9 = arith.constant 0 : index
    %7 = vector.load %arg3[%c0_8, %c4, %c0_9] : memref<1x32x16xf32, #tpu.memory_space<vmem>>, vector<1x12x16xf32>
    %8 = vector.shape_cast %7 : vector<1x12x16xf32> to vector<12x16xf32>
    %9 = vector.shape_cast %6 : vector<12x16xf32> to vector<1x12x16xf32>
    tpu.vector_store %arg3[%c0_8, %c4, %c0_9], %9 {strides = array<i32>} : memref<1x32x16xf32, #tpu.memory_space<vmem>>, vector<1x12x16xf32>,
    %c0_10 = arith.constant 0 : index
    %c8 = arith.constant 8 : index
    %c0_11 = arith.constant 0 : index
    %10 = vector.load %arg2[%c0_10, %c8, %c0_11] : memref<1x16x16xf32, #tpu.memory_space<vmem>>, vector<1x8x16xf32>
    %11 = vector.shape_cast %10 : vector<1x8x16xf32> to vector<8x16xf32>
    %c0_12 = arith.constant 0 : index
    %c16 = arith.constant 16 : index
    %c0_13 = arith.constant 0 : index
    %12 = vector.load %arg3[%c0_12, %c16, %c0_13] : memref<1x32x16xf32, #tpu.memory_space<vmem>>, vector<1x8x16xf32>
    %13 = vector.shape_cast %12 : vector<1x8x16xf32> to vector<8x16xf32>
    %14 = vector.shape_cast %11 : vector<8x16xf32> to vector<1x8x16xf32>
    tpu.vector_store %arg3[%c0_12, %c16, %c0_13], %14 {strides = array<i32>} : memref<1x32x16xf32, #tpu.memory_space<vmem>>, vector<1x8x16xf32>,
    %c0_14 = arith.constant 0 : index
    %c12 = arith.constant 12 : index
    %c0_15 = arith.constant 0 : index
    %15 = vector.load %arg2[%c0_14, %c12, %c0_15] : memref<1x16x16xf32, #tpu.memory_space<vmem>>, vector<1x4x16xf32>
    %16 = vector.shape_cast %15 : vector<1x4x16xf32> to vector<4x16xf32>
    %c0_16 = arith.constant 0 : index
    %c24 = arith.constant 24 : index
    %c0_17 = arith.constant 0 : index
    %17 = vector.load %arg3[%c0_16, %c24, %c0_17] : memref<1x32x16xf32, #tpu.memory_space<vmem>>, vector<1x4x16xf32>
    %18 = vector.shape_cast %17 : vector<1x4x16xf32> to vector<4x16xf32>
    %19 = vector.shape_cast %16 : vector<4x16xf32> to vector<1x4x16xf32>
    tpu.vector_store %arg3[%c0_16, %c24, %c0_17], %19 {strides = array<i32>} : memref<1x32x16xf32, #tpu.memory_space<vmem>>, vector<1x4x16xf32>,
    %c0_18 = arith.constant 0 : index
    %c12_19 = arith.constant 12 : index
    %c0_20 = arith.constant 0 : index
    %20 = vector.load %arg2[%c0_18, %c12_19, %c0_20] : memref<1x16x16xf32, #tpu.memory_space<vmem>>, vector<1x4x16xf32>
    %21 = vector.shape_cast %20 : vector<1x4x16xf32> to vector<4x16xf32>
    %c0_21 = arith.constant 0 : index
    %c28 = arith.constant 28 : index
    %c0_22 = arith.constant 0 : index
    %22 = vector.load %arg3[%c0_21, %c28, %c0_22] : memref<1x32x16xf32, #tpu.memory_space<vmem>>, vector<1x4x16xf32>
    %23 = vector.shape_cast %22 : vector<1x4x16xf32> to vector<4x16xf32>
    %24 = vector.shape_cast %21 : vector<4x16xf32> to vector<1x4x16xf32>
    tpu.vector_store %arg3[%c0_21, %c28, %c0_22], %24 {strides = array<i32>} : memref<1x32x16xf32, #tpu.memory_space<vmem>>, vector<1x4x16xf32>,
    return
  }
  func.func @transform_0(%arg0: i32, %arg1: i32) -> (i32, i32, i32) {
    %c0_i32 = arith.constant 0 : i32
    %c0_i32_0 = arith.constant 0 : i32
    return %arg0, %c0_i32, %arg1 : i32, i32, i32
  }
  func.func @transform_1(%arg0: i32, %arg1: i32) -> (i32, i32, i32) {
    %c0_i32 = arith.constant 0 : i32
    %c0_i32_0 = arith.constant 0 : i32
    return %arg0, %c0_i32, %arg1 : i32, i32, i32
  }
}

</mosaic_0001>

<llo_original>
// kernel: tpu_custom_call.1
$region0: #{tpu_custom_call.1}
  #allocation0 [shape = 'u32[]', space=smem, size = 0x4, offset = 0x4, fixed_abs, tag = 'smem constant byte address 0x4 - core index']
  #allocation1 [shape = 'u32[144,128]{1,0:T(1,128)}', space=vmem, size = 0x12000, scoped, tag = 'internal scratch']
  %s0 = inlined_call_operand.hbm [shape: f32[2,16,16], index: 0, kind: input, shape index: {}]
  %s1 = inlined_call_operand.vmem [shape: f32[2,32,16], index: 1, kind: output, shape index: {}]
  %s2 = sld [smem:[#allocation0]]
  $region41: #{tpu_custom_call.1} parent=0
    _
  %s4 = ssub.s32 1, %s2
  %s5 = scalar_select 0, %s4, %s2
  $region1: #{tpu_custom_call.1} parent=0
    #allocation2 [shape = 'u8[16384]{0}', space=vmem, size = 0x4000, scoped, tag = 'input window, operand 0']
    #allocation3 [shape = 's32[2]{0}', space=sflag, size = 0x8, scoped, tag = 'scoped memory for tpu_custom_call.1']
    %6 = vsyncpa [#allocation3], 0
    %s7 = scalar_lea.sflag [#allocation3], 1
    %8 = vsyncpa %s7, 0
    loop: start=0, step=1, limit=4
    $region2: #{tpu_custom_call.1} parent=1 // loop_pre_header
      _
    $region3: #{tpu_custom_call.1} parent=1 // loop_header
      %s10 = sphi 0, %s14
      %p11 = scmp.ge.s32.totalorder %s10, 4
      %s17 = sphi 0, %s29
      %s18 = sphi 0, %s25
      %s19 = sphi 0, %s17
      %s20 = sphi 0, %s18
      %s21 = sphi 0, %s19
      %s22 = sphi 0, %s20
      %s34 = sphi 0, %s36
      %s37 = sphi 0, %s34
      %s38 = sphi 0, %s37
      %s54 = sphi 0, %s38
      %s62 = sphi 0, %s64
      %s65 = sphi 0, %s62
      %s66 = sphi 0, %s65
      %s82 = sphi 0, %s66
    $region4: #{tpu_custom_call.1} parent=1 // loop_header_branch
      %13 = sbr.rel (%p11) target = $region8
    $region5: #{tpu_custom_call.1} parent=1 // loop_body
      %s15 = ssub.s32 %s10, 1
      %s16 = ssub.s32 %s10, 2
      %s23 = sadd.s32 1, %s18
      %p24 = scmp.ge.s32.totalorder %s23, 1
      %s25 = scalar_select %p24, 0, %s23
      %s26 = sadd.s32 1, %s17
      %s27 = scalar_select %p24, %s26, %s17
      %p28 = scmp.ge.s32.totalorder %s27, 2
      %s29 = scalar_select %p28, 0, %s27
      %s30 = ssub.s32 %s17, %s29
      %s31 = ssub.s32 %s18, %s25
      %s32 = sor.u32 %s30, %s31
      %p33 = scmp.eq.s32.totalorder %s32, 0
      %s35 = sadd.s32 %s34, 1
      %s36 = scalar_select %p33, %s34, %s35
      %p39 = pneg %p33
      %p40 = scmp.eq.s32.totalorder %s10, 1
      %p41 = por %p39, %p40
      %p42 = scmp.ne.s32.totalorder %s34, %s37
      %p43 = scmp.eq.s32.totalorder %s10, 0
      %p44 = por %p42, %p43
      %p45 = scmp.ne.s32.totalorder %s34, %s37
      %p46 = scmp.eq.s32.totalorder %s15, 1
      %p47 = por %p45, %p46
      %p48 = scmp.ne.s32.totalorder %s37, %s38
      %p49 = scmp.eq.s32.totalorder %s15, 0
      %p50 = por %p48, %p49
      %p51 = scmp.ne.s32.totalorder %s37, %s38
      %p52 = scmp.eq.s32.totalorder %s16, 1
      %p53 = por %p51, %p52
      %p55 = scmp.ne.s32.totalorder %s38, %s54
      %p56 = scmp.eq.s32.totalorder %s16, 0
      %p57 = por %p55, %p56
      %s58 = ssub.s32 %s17, %s29
      %s59 = ssub.s32 %s18, %s25
      %s60 = sor.u32 %s58, %s59
      %p61 = scmp.eq.s32.totalorder %s60, 0
      %s63 = sadd.s32 %s62, 1
      %s64 = scalar_select %p61, %s62, %s63
      %p67 = pneg %p61
      %p68 = scmp.eq.s32.totalorder %s10, 1
      %p69 = por %p67, %p68
      %p70 = scmp.ne.s32.totalorder %s62, %s65
      %p71 = scmp.eq.s32.totalorder %s10, 0
      %p72 = por %p70, %p71
      %p73 = scmp.ne.s32.totalorder %s62, %s65
      %p74 = scmp.eq.s32.totalorder %s15, 1
      %p75 = por %p73, %p74
      %p76 = scmp.ne.s32.totalorder %s65, %s66
      %p77 = scmp.eq.s32.totalorder %s15, 0
      %p78 = por %p76, %p77
      %p79 = scmp.ne.s32.totalorder %s65, %s66
      %p80 = scmp.eq.s32.totalorder %s16, 1
      %p81 = por %p79, %p80
      %p83 = scmp.ne.s32.totalorder %s66, %s82
      %p84 = scmp.eq.s32.totalorder %s16, 0
      %p85 = por %p83, %p84
      %p86 = scmp.le.s32.totalorder 1, %s10
      %p87 = scmp.lt.s32.totalorder %s10, 3
      %p88 = pnand %p86, %p87
      %p89 = pneg %p88
      // Predicated region
      $region9: #{tpu_custom_call.1} parent=5 // pred_check
        _
      $region10: #{tpu_custom_call.1} parent=5 // pred_check_branch
        %91 = sbr.rel (%p88) target = $region12
      $region11: #{tpu_custom_call.1} parent=5 // pred_region
        %s92 = ssub.s32 %s10, 1
      $region12: #{tpu_custom_call.1} parent=5 // pred_fallthru
        _
      %p93 = scmp.lt.s32.totalorder %s10, 2
      // Predicated region
      $region13: #{tpu_custom_call.1} parent=5 // pred_check
        %p94 = pneg %p93
      $region14: #{tpu_custom_call.1} parent=5 // pred_check_branch
        %96 = sbr.rel (%p94) target = $region16
      $region15: #{tpu_custom_call.1} parent=5 // pred_region
        // Predicated region
        $region17: #{tpu_custom_call.1} parent=15 // pred_check
          %p97 = pneg %p44
        $region18: #{tpu_custom_call.1} parent=15 // pred_check_branch
          %99 = sbr.rel (%p97) target = $region20
        $region19: #{tpu_custom_call.1} parent=15 // pred_region
          %s100 = sand.u32 %s34, 1
          %s101 = scalar_lea.sflag [#allocation3], %s100
          %s102 = sand.u32 %s34, 1
          %s103 = smul.addr %s102, 16
          %s104 = scalar_lea.vmem [#allocation2], %s103
          %s106 = ssub.s32 256, 256
          %107 = vsyncadd %s101, %s106
          %s108 = smul.addr %s17, 2
          %s109 = sadd.s32 %s18, %s108
          %s110 = smul.addr %s109, 128
          %s111 = scalar_lea.hbm %s0, %s110
          %s112 = sshll.u32 %s104, 4
          %s113 = int_to_ptr.vmem [resolvable:$true] %s112
          %118 = dma.hbm_to_vmem [thread:$0]  %s111, 256, %s113, %s101, 128, 128, 8
        $region20: #{tpu_custom_call.1} parent=15 // pred_fallthru
          _
      $region16: #{tpu_custom_call.1} parent=5 // pred_fallthru
        _
      %p119 = scmp.le.s32.totalorder 1, %s10
      %p120 = scmp.lt.s32.totalorder %s10, 3
      %p121 = pnand %p119, %p120
      %p122 = pneg %p121
      // Predicated region
      $region21: #{tpu_custom_call.1} parent=5 // pred_check
        _
      $region22: #{tpu_custom_call.1} parent=5 // pred_check_branch
        %124 = sbr.rel (%p121) target = $region24
      $region23: #{tpu_custom_call.1} parent=5 // pred_region
        %s125 = ssub.s32 %s10, 1
        %s126 = sand.u32 %s37, 1
        %s127 = scalar_lea.sflag [#allocation3], %s126
        %s128 = sand.u32 %s37, 1
        %s129 = smul.addr %s128, 16
        %s130 = scalar_lea.vmem [#allocation2], %s129
        // Predicated region
        $region25: #{tpu_custom_call.1} parent=23 // pred_check
          %p131 = pneg %p50
        $region26: #{tpu_custom_call.1} parent=23 // pred_check_branch
          %133 = sbr.rel (%p131) target = $region28
        $region27: #{tpu_custom_call.1} parent=23 // pred_region
          %134 = dma.done %s127, 256
        $region28: #{tpu_custom_call.1} parent=23 // pred_fallthru
          _
        %s135 = sand.u32 %s37, 1
        %s136 = scalar_lea.sflag [#allocation3], %s135
        %s137 = sand.u32 %s37, 1
        %s138 = smul.addr %s137, 16
        %s139 = scalar_lea.vmem [#allocation2], %s138
        %p140 = pneg %p50
        %p141 = pneg %p47
        %p142 = pneg %p78
        %p143 = pneg %p75
        %p144 = scmp.lt.s32.totalorder %s19, 1
        %s145 = scalar_select %p144, %s19, 1
        %p146 = scmp.lt.s32.totalorder %s20, 0
        %s147 = scalar_select %p146, %s20, 0
        %s148 = smul.addr %s145, 4
        %s149 = sadd.s32 %s147, %s148
        %s150 = smul.addr %s149, 8
        %s151 = scalar_lea.vmem %s1, %s150
        %p152 = scmp.lt.s32.totalorder %s19, 1
        %s153 = scalar_select %p152, %s19, 1
        %p154 = scmp.lt.s32.totalorder %s20, 0
        %s155 = scalar_select %p154, %s20, 0
        %s156 = smul.addr %s153, 4
        %s157 = sadd.s32 %s155, %s156
        %s158 = smul.addr %s157, 8
        %s159 = scalar_lea.vmem %s1, %s158
        %v160 = vld [vmem:[%s130] sm:$0xf]
        %vm161 = vcmask 125952
        %162 = vst.msk [vmem:[%s159] sm:$0xf] %vm161, %v160
        %v163 = vld [vmem:[%s130] sm:$0xff]
        %v164 = vld [vmem:[%s130 + $0x8] sm:$0xf]
        %vm165 = vcmask 130048
        %166 = vst.msk [vmem:[%s159 + $0x4] sm:$0xff] %vm165, %v163
        %167 = vst.msk [vmem:[%s159 + $0xc] sm:$0xf] %vm161, %v164
        %v168 = vld [vmem:[%s130 + $0x8] sm:$0xff]
        %169 = vst.msk [vmem:[%s159 + $0x10] sm:$0xff] %vm165, %v168
        %v170 = vld [vmem:[%s130 + $0xc] sm:$0xf]
        %171 = vst.msk [vmem:[%s159 + $0x18] sm:$0xf] %vm161, %v170
        %v172 = vld [vmem:[%s130 + $0xc] sm:$0xf]
        %173 = vst.msk [vmem:[%s159 + $0x1c] sm:$0xf] %vm161, %v172
        %p174 = scmp.lt.s32.totalorder %s19, 1
        %s175 = scalar_select %p174, %s19, 1
        %p176 = scmp.lt.s32.totalorder %s20, 0
        %s177 = scalar_select %p176, %s20, 0
        %s178 = smul.addr %s175, 4
        %s179 = sadd.s32 %s177, %s178
        %s180 = smul.addr %s179, 8
        %s181 = scalar_lea.vmem %s1, %s180
        // Predicated region
        $region29: #{tpu_custom_call.1} parent=23 // pred_check
          %p182 = pneg %p75
        $region30: #{tpu_custom_call.1} parent=23 // pred_check_branch
          %184 = sbr.rel (%p182) target = $region32
        $region31: #{tpu_custom_call.1} parent=23 // pred_region
          _
        $region32: #{tpu_custom_call.1} parent=23 // pred_fallthru
          _
      $region24: #{tpu_custom_call.1} parent=5 // pred_fallthru
        _
      %p185 = scmp.le.s32.totalorder 2, %s10
      // Predicated region
      $region33: #{tpu_custom_call.1} parent=5 // pred_check
        %p186 = pneg %p185
      $region34: #{tpu_custom_call.1} parent=5 // pred_check_branch
        %188 = sbr.rel (%p186) target = $region36
      $region35: #{tpu_custom_call.1} parent=5 // pred_region
        %s189 = ssub.s32 %s10, 2
        // Predicated region
        $region37: #{tpu_custom_call.1} parent=35 // pred_check
          %p190 = pneg %p81
        $region38: #{tpu_custom_call.1} parent=35 // pred_check_branch
          %192 = sbr.rel (%p190) target = $region40
        $region39: #{tpu_custom_call.1} parent=35 // pred_region
          %p193 = scmp.lt.s32.totalorder %s21, 1
          %s194 = scalar_select %p193, %s21, 1
          %p195 = scmp.lt.s32.totalorder %s22, 0
          %s196 = scalar_select %p195, %s22, 0
          %s197 = smul.addr %s194, 4
          %s198 = sadd.s32 %s196, %s197
          %s199 = smul.addr %s198, 8
          %s200 = scalar_lea.vmem %s1, %s199
        $region40: #{tpu_custom_call.1} parent=35 // pred_fallthru
          _
      $region36: #{tpu_custom_call.1} parent=5 // pred_fallthru
        _
    $region6: #{tpu_custom_call.1} parent=1 // loop_footer
      %s14 = sadd.s32 1, %s10
    $region7: #{tpu_custom_call.1} parent=1 // loop_footer_branch
      %9 = sbr.rel target = $region3
    $region8: #{tpu_custom_call.1} parent=1 // loop_exit
      _
    %201 = vsyncpa [#allocation3], 1
    %s202 = scalar_lea.sflag [#allocation3], 1
    %203 = vsyncpa %s202, 1

</llo_original>
